<compile_context>
chip_gen: v6e
topology: v6e:2x2x1
jax: 0.10.0
libtpu: 0.0.40
codegen_flags: <defaults>
</compile_context>

<pallas_src>
import jax
import jax.numpy as jnp
from jax.experimental import pallas as pl
from jax.experimental.pallas import tpu as pltpu


def _round_up(x, m):
    return (x + m - 1) // m * m


def _pad2(m, rows, cols):
    return jnp.pad(m, ((0, rows - m.shape[0]), (0, cols - m.shape[1])))


def _vmem_limit_bytes():
    # Derive the scoped-VMEM limit from the hardware (v7x has 64 MiB vs
    # 128 MiB on v5e/v6e); never go past ~48 MiB so double buffers still fit.
    try:
        cap = pltpu.get_tpu_info().vmem_capacity_bytes
        return int(min(48 * 1024 * 1024, (cap * 3) // 4))
    except Exception:
        return 32 * 1024 * 1024


# ----------------------------------------------------------------------------
# Kernel bodies
# ----------------------------------------------------------------------------
def fused_gcn_small_kernel(a_ref, x_ref, w0_ref, b0_ref, w1_ref, b1_ref,
                           w2_ref, b2_ref, o_ref):
    """Whole graph resident in VMEM: both GCN layers + SiLU + final Linear.

    a_hat is loaded once and reused for both aggregations; the inter-layer
    activation never leaves VMEM.
    """
    a = a_ref[...]                                   # bf16 [n_pad, n_pad]
    # ---- GCNConv 0 + SiLU ----
    xw = jnp.dot(x_ref[...], w0_ref[...], preferred_element_type=jnp.float32)
    h = jnp.dot(a, xw.astype(jnp.bfloat16), preferred_element_type=jnp.float32)
    h = h + b0_ref[...]
    h = (h * jax.nn.sigmoid(h)).astype(jnp.bfloat16)       # SiLU (EUP)
    # ---- GCNConv 1 + SiLU ----
    xw = jnp.dot(h, w1_ref[...], preferred_element_type=jnp.float32)
    h = jnp.dot(a, xw.astype(jnp.bfloat16), preferred_element_type=jnp.float32)
    h = h + b1_ref[...]
    h = (h * jax.nn.sigmoid(h)).astype(jnp.bfloat16)
    # ---- Final Linear ----
    o_ref[...] = (jnp.dot(h, w2_ref[...], preferred_element_type=jnp.float32)
                  + b2_ref[...])


def gcn_layer_kernel(a_ref, x_ref, w_ref, b_ref, o_ref, acc_ref):
    """o = SiLU(a_hat @ (x @ W) + b), feature matmul fused into the
    contraction loop, accumulated over the (last, "arbitrary") grid axis."""
    k = pl.program_id(1)

    @pl.when(k == 0)
    def _():
        acc_ref[...] = jnp.zeros_like(acc_ref)

    # Recompute this contraction slice's feature matmul (W pinned in VMEM);
    # extra MXU work is ~f_pad/tm <= 25% and hides under the HBM roofline.
    xw = jnp.dot(x_ref[...], w_ref[...],
                 preferred_element_type=jnp.float32).astype(jnp.bfloat16)
    acc_ref[...] += jnp.dot(a_ref[...], xw, preferred_element_type=jnp.float32)

    @pl.when(k == pl.num_programs(1) - 1)
    def _():
        h = acc_ref[...] + b_ref[...]
        # SiLU epilogue stays in f32 on the accumulator (EUP slot, off the
        # MXU critical path; avoids bf16 VPU ops v5e lacks).
        o_ref[...] = (h * jax.nn.sigmoid(h)).astype(o_ref.dtype)


def linear_kernel(x_ref, w_ref, b_ref, o_ref):
    """o = x @ W + b  (bf16 operands, f32 accumulate)."""
    acc = jnp.dot(x_ref[...], w_ref[...], preferred_element_type=jnp.float32)
    o_ref[...] = (acc + b_ref[...]).astype(o_ref.dtype)


# ----------------------------------------------------------------------------
# pallas_call wrappers
# ----------------------------------------------------------------------------
def fused_gcn_small(a_hat, x, w0, b0, w1, b1, w2, b2):
    n, f = x.shape
    return pl.pallas_call(
        fused_gcn_small_kernel,
        out_shape=jax.ShapeDtypeStruct((n, f), jnp.float32),
        compiler_params=pltpu.CompilerParams(
            vmem_limit_bytes=_vmem_limit_bytes()),
    )(a_hat, x, w0, b0, w1, b1, w2, b2)


def gcn_layer(a_hat, x, w, b, *, tm, tk):
    """SiLU(a_hat @ (x @ W) + b); a_hat [N,N] bf16, x [N,F] bf16, W pinned."""
    n = a_hat.shape[0]
    f = w.shape[1]
    return pl.pallas_call(
        gcn_layer_kernel,
        out_shape=jax.ShapeDtypeStruct((n, f), jnp.bfloat16),
        grid_spec=pltpu.PrefetchScalarGridSpec(
            num_scalar_prefetch=0,
            grid=(n // tm, n // tk),                     # contraction axis last
            in_specs=[
                pl.BlockSpec((tm, tk), lambda i, k: (i, k)),   # a_hat stream
                pl.BlockSpec((tk, f), lambda i, k: (k, 0)),    # x slice
                pl.BlockSpec((f, f), lambda i, k: (0, 0)),     # pinned W
                pl.BlockSpec((1, f), lambda i, k: (0, 0)),     # pinned bias
            ],
            out_specs=pl.BlockSpec((tm, f), lambda i, k: (i, 0)),
            scratch_shapes=[pltpu.VMEM((tm, f), jnp.float32)],
        ),
        compiler_params=pltpu.CompilerParams(
            dimension_semantics=("parallel", "arbitrary"),
            vmem_limit_bytes=_vmem_limit_bytes()),
    )(a_hat, x, w, b)


def linear_matmul(x, w, b, *, tm, out_dtype=jnp.float32):
    n, f_in = x.shape
    f_out = w.shape[1]
    return pl.pallas_call(
        linear_kernel,
        out_shape=jax.ShapeDtypeStruct((n, f_out), out_dtype),
        grid_spec=pltpu.PrefetchScalarGridSpec(
            num_scalar_prefetch=0,
            grid=(n // tm,),
            in_specs=[
                pl.BlockSpec((tm, f_in), lambda i: (i, 0)),
                pl.BlockSpec((f_in, f_out), lambda i: (0, 0)),   # pinned
                pl.BlockSpec((1, f_out), lambda i: (0, 0)),      # pinned
            ],
            out_specs=pl.BlockSpec((tm, f_out), lambda i: (i, 0)),
        ),
        compiler_params=pltpu.CompilerParams(
            dimension_semantics=("parallel",),
            vmem_limit_bytes=_vmem_limit_bytes()),
    )(x, w, b)


# ----------------------------------------------------------------------------
# Graph glue + forward
# ----------------------------------------------------------------------------
def build_norm_adj(edge_index, num_nodes, n_pad=None, dtype=jnp.float32):
    """Dense D^{-1/2} (A + I) D^{-1/2} (PyG gcn_norm defaults), built directly
    at the padded size so no separate O(N^2) pad pass is needed."""
    if n_pad is None:
        n_pad = num_nodes
    src, dst = edge_index[0], edge_index[1]
    loop = jnp.arange(num_nodes, dtype=src.dtype)
    src = jnp.concatenate([src, loop])
    dst = jnp.concatenate([dst, loop])
    ew = jnp.ones(src.shape[0], dtype=jnp.float32)
    deg = jnp.zeros((num_nodes,), jnp.float32).at[dst].add(ew)
    dinv = jnp.where(deg > 0.0, 1.0 / jnp.sqrt(deg), 0.0)
    norm = dinv[src] * dinv[dst]
    # message flows src -> dst, so a_hat[dst, src] carries the edge weight.
    a = jnp.zeros((n_pad, n_pad), jnp.float32).at[dst, src].add(norm)
    return a.astype(dtype)


_SMALL_NPAD_MAX = 1024   # whole-graph-in-VMEM threshold (safe on v7x 64 MiB)


def gcn_forward(x, edge_index, params):
    """Forward pass of the gcn module.

    params use torch layout: w* = [out_features, in_features], b* = [out_features].
    Returns [num_nodes, output_size] float32.
    """
    w0, b0, w1, b1, w2, b2 = params
    num_nodes, f_in = x.shape
    f_out = w2.shape[0]

    # Lane-dense feature padding over ALL layer dims (robust to hidden != in).
    all_dims = (f_in, w0.shape[0], w0.shape[1], w1.shape[0], w1.shape[1],
                w2.shape[0], w2.shape[1])
    f_pad = _round_up(max(all_dims), 128)

    def pad_w(w):   # torch [out, in] -> padded [in, out] bf16 MXU operand
        return _pad2(w.T, f_pad, f_pad).astype(jnp.bfloat16)

    def pad_b(b):   # -> [1, f_pad] f32
        return _pad2(b.reshape(1, -1), 1, f_pad).astype(jnp.float32)

    w0_p, w1_p, w2_p = pad_w(w0), pad_w(w1), pad_w(w2)
    b0_p, b1_p, b2_p = pad_b(b0), pad_b(b1), pad_b(b2)

    if _round_up(num_nodes, 128) <= _SMALL_NPAD_MAX:
        # Whole graph fits comfortably in VMEM: one fused pallas_call, a_hat
        # read once for both layers, no intermediate HBM traffic.
        n_pad = _round_up(max(num_nodes, 128), 128)
        a_p = build_norm_adj(edge_index, num_nodes, n_pad, jnp.bfloat16)
        x_p = _pad2(x, n_pad, f_pad).astype(jnp.bfloat16)
        out = fused_gcn_small(a_p, x_p, w0_p, b0_p, w1_p, b1_p, w2_p, b2_p)
        return out[:num_nodes, :f_out]

    # Large graphs: tiled HBM-streaming path.  tm=512 gives >=3 row tiles
    # (v7x megacore has work for both cores); tk as large as divides n_pad
    # (256-multiples) so the a_hat stream approaches the HBM roofline.
    n_pad = _round_up(num_nodes, 512)
    tm = 512
    tk = 2048 if n_pad % 2048 == 0 else (1024 if n_pad % 1024 == 0 else 512)
    tm_lin = 1024 if (n_pad % 1024 == 0 and n_pad >= 2048) else 512

    a_p = build_norm_adj(edge_index, num_nodes, n_pad, jnp.bfloat16)
    x_p = _pad2(x, n_pad, f_pad).astype(jnp.bfloat16)

    # GCNConv 0/1 + SiLU with x@W fused into the aggregation (no xw round trip).
    h = gcn_layer(a_p, x_p, w0_p, b0_p, tm=tm, tk=tk)
    h = gcn_layer(a_p, h, w1_p, b1_p, tm=tm, tk=tk)
    # Final Linear with a large, decoupled row tile.
    out = linear_matmul(h, w2_p, b2_p, tm=tm_lin, out_dtype=jnp.float32)
    return out[:num_nodes, :f_out]


def reference_forward(x, edge_index, params):
    """Pure-JAX float32 reference of the PyTorch module."""
    w0, b0, w1, b1, w2, b2 = params
    a_hat = build_norm_adj(edge_index, x.shape[0])
    h = a_hat @ (x @ w0.T) + b0
    h = jax.nn.silu(h)
    h = a_hat @ (h @ w1.T) + b1
    h = jax.nn.silu(h)
    return h @ w2.T + b2


if __name__ == "__main__":
    input_size = 32     # args.input_size
    output_size = 16    # args.output_size

    key = jax.random.PRNGKey(0)
    kp, kx_small, kx_big = jax.random.split(key, 3)

    def make_params(k):
        k0, k1, k2, kb0, kb1, kb2 = jax.random.split(k, 6)
        s = 1.0 / jnp.sqrt(jnp.float32(input_size))
        w0 = jax.random.normal(k0, (input_size, input_size), jnp.float32) * s
        w1 = jax.random.normal(k1, (input_size, input_size), jnp.float32) * s
        w2 = jax.random.normal(k2, (output_size, input_size), jnp.float32) * s
        b0 = jax.random.normal(kb0, (input_size,), jnp.float32) * 0.1
        b1 = jax.random.normal(kb1, (input_size,), jnp.float32) * 0.1
        b2 = jax.random.normal(kb2, (output_size,), jnp.float32) * 0.1
        return (w0, b0, w1, b1, w2, b2)

    def ring_edges(n):   # deterministic undirected ring graph
        src = jnp.arange(n, dtype=jnp.int32)
        dst = (src + 1) % n
        return jnp.stack([jnp.concatenate([src, dst]),
                          jnp.concatenate([dst, src])], axis=0)

    params = make_params(kp)

    # ---- small graph (module's nominal shapes): fused in-VMEM path ----
    n_small = 8
    x_s = jax.random.normal(kx_small, (n_small, input_size), jnp.float32)
    e_s = ring_edges(n_small)
    out_s = jax.block_until_ready(gcn_forward(x_s, e_s, params))
    ref_s = reference_forward(x_s, e_s, params)
    assert out_s.shape == (n_small, output_size)
    assert jnp.allclose(out_s, ref_s, atol=5e-2, rtol=5e-2), \
        float(jnp.max(jnp.abs(out_s - ref_s)))

    # ---- larger graph: exercises the tiled fused-aggregation path ----
    n_big = 1100
    x_b = jax.random.normal(kx_big, (n_big, input_size), jnp.float32)
    e_b = ring_edges(n_big)
    out_b = jax.block_until_ready(gcn_forward(x_b, e_b, params))
    ref_b = reference_forward(x_b, e_b, params)
    assert out_b.shape == (n_big, output_size)
    assert jnp.allclose(out_b, ref_b, atol=5e-2, rtol=5e-2), \
        float(jnp.max(jnp.abs(out_b - ref_b)))

    print("KERNEL_OK")
</pallas_src>

<mosaic_0001>
module attributes {stable_mosaic.version = 11 : i64} {
  func.func @fused_gcn_small_kernel(%arg0: memref<128x128xbf16, #tpu.memory_space<vmem>>, %arg1: memref<128x128xbf16, #tpu.memory_space<vmem>>, %arg2: memref<128x128xbf16, #tpu.memory_space<vmem>>, %arg3: memref<1x128xf32, #tpu.memory_space<vmem>>, %arg4: memref<128x128xbf16, #tpu.memory_space<vmem>>, %arg5: memref<1x128xf32, #tpu.memory_space<vmem>>, %arg6: memref<128x128xbf16, #tpu.memory_space<vmem>>, %arg7: memref<1x128xf32, #tpu.memory_space<vmem>>, %arg8: memref<128x128xf32, #tpu.memory_space<vmem>>) attributes {dimension_semantics = [], scalar_prefetch = 0 : i64, scratch_operands = 0 : i64, tpu.core_type = #tpu.core_type<tc>} {
    %c0 = arith.constant 0 : index
    %c0_0 = arith.constant 0 : index
    %0 = vector.load %arg0[%c0, %c0_0] : memref<128x128xbf16, #tpu.memory_space<vmem>>, vector<128x128xbf16>
    %c0_1 = arith.constant 0 : index
    %c0_2 = arith.constant 0 : index
    %1 = vector.load %arg1[%c0_1, %c0_2] : memref<128x128xbf16, #tpu.memory_space<vmem>>, vector<128x128xbf16>
    %c0_3 = arith.constant 0 : index
    %c0_4 = arith.constant 0 : index
    %2 = vector.load %arg2[%c0_3, %c0_4] : memref<128x128xbf16, #tpu.memory_space<vmem>>, vector<128x128xbf16>
    %cst = arith.constant dense<0.000000e+00> : vector<128x128xf32>
    %3 = tpu.matmul %1, %2, %cst {dimension_numbers = #tpu.dot_dimension_numbers<[1], [0], [0], [1], [0, 0, 1, 1], [], []>} : vector<128x128xbf16>, vector<128x128xbf16>, vector<128x128xf32> -> vector<128x128xf32>
    %4 = arith.truncf %3 : vector<128x128xf32> to vector<128x128xbf16>
    %cst_5 = arith.constant dense<0.000000e+00> : vector<128x128xf32>
    %5 = tpu.matmul %0, %4, %cst_5 {dimension_numbers = #tpu.dot_dimension_numbers<[1], [0], [0], [1], [0, 0, 1, 1], [], []>} : vector<128x128xbf16>, vector<128x128xbf16>, vector<128x128xf32> -> vector<128x128xf32>
    %c0_6 = arith.constant 0 : index
    %c0_7 = arith.constant 0 : index
    %6 = vector.load %arg3[%c0_6, %c0_7] : memref<1x128xf32, #tpu.memory_space<vmem>>, vector<1x128xf32>
    %7 = vector.broadcast %6 : vector<1x128xf32> to vector<128x128xf32>
    %8 = arith.addf %5, %7 : vector<128x128xf32>
    %9 = arith.negf %8 : vector<128x128xf32>
    %10 = math.exp %9 : vector<128x128xf32>
    %cst_8 = arith.constant 1.000000e+00 : f32
    %11 = vector.broadcast %cst_8 : f32 to vector<128x128xf32>
    %12 = arith.addf %11, %10 : vector<128x128xf32>
    %13 = arith.divf %11, %12 : vector<128x128xf32>
    %14 = arith.mulf %8, %13 : vector<128x128xf32>
    %15 = arith.truncf %14 : vector<128x128xf32> to vector<128x128xbf16>
    %c0_9 = arith.constant 0 : index
    %c0_10 = arith.constant 0 : index
    %16 = vector.load %arg4[%c0_9, %c0_10] : memref<128x128xbf16, #tpu.memory_space<vmem>>, vector<128x128xbf16>
    %cst_11 = arith.constant dense<0.000000e+00> : vector<128x128xf32>
    %17 = tpu.matmul %15, %16, %cst_11 {dimension_numbers = #tpu.dot_dimension_numbers<[1], [0], [0], [1], [0, 0, 1, 1], [], []>} : vector<128x128xbf16>, vector<128x128xbf16>, vector<128x128xf32> -> vector<128x128xf32>
    %18 = arith.truncf %17 : vector<128x128xf32> to vector<128x128xbf16>
    %cst_12 = arith.constant dense<0.000000e+00> : vector<128x128xf32>
    %19 = tpu.matmul %0, %18, %cst_12 {dimension_numbers = #tpu.dot_dimension_numbers<[1], [0], [0], [1], [0, 0, 1, 1], [], []>} : vector<128x128xbf16>, vector<128x128xbf16>, vector<128x128xf32> -> vector<128x128xf32>
    %c0_13 = arith.constant 0 : index
    %c0_14 = arith.constant 0 : index
    %20 = vector.load %arg5[%c0_13, %c0_14] : memref<1x128xf32, #tpu.memory_space<vmem>>, vector<1x128xf32>
    %21 = vector.broadcast %20 : vector<1x128xf32> to vector<128x128xf32>
    %22 = arith.addf %19, %21 : vector<128x128xf32>
    %23 = arith.negf %22 : vector<128x128xf32>
    %24 = math.exp %23 : vector<128x128xf32>
    %cst_15 = arith.constant 1.000000e+00 : f32
    %25 = vector.broadcast %cst_15 : f32 to vector<128x128xf32>
    %26 = arith.addf %25, %24 : vector<128x128xf32>
    %27 = arith.divf %25, %26 : vector<128x128xf32>
    %28 = arith.mulf %22, %27 : vector<128x128xf32>
    %29 = arith.truncf %28 : vector<128x128xf32> to vector<128x128xbf16>
    %c0_16 = arith.constant 0 : index
    %c0_17 = arith.constant 0 : index
    %30 = vector.load %arg6[%c0_16, %c0_17] : memref<128x128xbf16, #tpu.memory_space<vmem>>, vector<128x128xbf16>
    %cst_18 = arith.constant dense<0.000000e+00> : vector<128x128xf32>
    %31 = tpu.matmul %29, %30, %cst_18 {dimension_numbers = #tpu.dot_dimension_numbers<[1], [0], [0], [1], [0, 0, 1, 1], [], []>} : vector<128x128xbf16>, vector<128x128xbf16>, vector<128x128xf32> -> vector<128x128xf32>
    %c0_19 = arith.constant 0 : index
    %c0_20 = arith.constant 0 : index
    %32 = vector.load %arg7[%c0_19, %c0_20] : memref<1x128xf32, #tpu.memory_space<vmem>>, vector<1x128xf32>
    %33 = vector.broadcast %32 : vector<1x128xf32> to vector<128x128xf32>
    %34 = arith.addf %31, %33 : vector<128x128xf32>
    %c0_21 = arith.constant 0 : index
    %c0_22 = arith.constant 0 : index
    %35 = vector.load %arg8[%c0_21, %c0_22] : memref<128x128xf32, #tpu.memory_space<vmem>>, vector<128x128xf32>
    tpu.vector_store %arg8[%c0_21, %c0_22], %34 {strides = array<i32>} : memref<128x128xf32, #tpu.memory_space<vmem>>, vector<128x128xf32>,
    return
  }
}

</mosaic_0001>

<llo_original>
// kernel: tpu_custom_call.1
$region0: #{tpu_custom_call.1}
  #allocation0 [shape = 'u32[]', space=smem, size = 0x4, offset = 0x4, fixed_abs, tag = 'smem constant byte address 0x4 - core index']
  #allocation1 [shape = 'u32[144,128]{1,0:T(1,128)}', space=vmem, size = 0x12000, scoped, tag = 'internal scratch']
  %s0 = inlined_call_operand.hbm [shape: bf16[128,128], index: 0, kind: input, shape index: {}]
  %s1 = inlined_call_operand.hbm [shape: bf16[128,128], index: 1, kind: input, shape index: {}]
  %s2 = inlined_call_operand.hbm [shape: bf16[128,128], index: 2, kind: input, shape index: {}]
  %s3 = inlined_call_operand.vmem [shape: f32[1,128], index: 3, kind: input, shape index: {}]
  %s4 = inlined_call_operand.hbm [shape: bf16[128,128], index: 4, kind: input, shape index: {}]
  %s5 = inlined_call_operand.vmem [shape: f32[1,128], index: 5, kind: input, shape index: {}]
  %s6 = inlined_call_operand.hbm [shape: bf16[128,128], index: 6, kind: input, shape index: {}]
  %s7 = inlined_call_operand.vmem [shape: f32[1,128], index: 7, kind: input, shape index: {}]
  %s8 = inlined_call_operand.hbm [shape: f32[128,128], index: 8, kind: output, shape index: {}]
  %s9 = sld [smem:[#allocation0]]
  $region62: #{tpu_custom_call.1} parent=0
    _
  %s11 = ssub.s32 1, %s9
  %s12 = scalar_select 0, %s11, %s9
  $region1: #{tpu_custom_call.1} parent=0
    #allocation2 [shape = 'u8[32768]{0}', space=vmem, size = 0x8000, scoped, tag = 'input window, operand 0, single buffered']
    #allocation3 [shape = 's32[1]{0}', space=sflag, size = 0x4, scoped, tag = 'scoped memory for tpu_custom_call.1']
    #allocation4 [shape = 's32[1]{0}', space=sflag, size = 0x4, scoped, tag = 'scoped memory for tpu_custom_call.1']
    #allocation5 [shape = 'u8[32768]{0}', space=vmem, size = 0x8000, scoped, tag = 'input window, operand 1, single buffered']
    #allocation6 [shape = 's32[1]{0}', space=sflag, size = 0x4, scoped, tag = 'scoped memory for tpu_custom_call.1']
    #allocation7 [shape = 'u8[32768]{0}', space=vmem, size = 0x8000, scoped, tag = 'input window, operand 2, single buffered']
    #allocation8 [shape = 'u8[32768]{0}', space=vmem, size = 0x8000, scoped, tag = 'input window, operand 4, single buffered']
    #allocation9 [shape = 's32[1]{0}', space=sflag, size = 0x4, scoped, tag = 'scoped memory for tpu_custom_call.1']
    #allocation10 [shape = 'u8[32768]{0}', space=vmem, size = 0x8000, scoped, tag = 'input window, operand 6, single buffered']
    #allocation11 [shape = 'u8[65536]{0}', space=vmem, size = 0x10000, scoped, tag = 'output window, operand 0, single buffered']
    %13 = vsyncpa [#allocation3], 0
    %14 = vsyncpa [#allocation6], 0
    %15 = vsyncpa [#allocation9], 0
    %16 = vsyncpa [#allocation4], 0
    // Predicated region
    $region2: #{tpu_custom_call.1} parent=1 // pred_check
      _
    $region3: #{tpu_custom_call.1} parent=1 // pred_check_branch
      %18 = sbr.rel (0) target = $region5
    $region4: #{tpu_custom_call.1} parent=1 // pred_region
      %s20 = ssub.s32 1024, 1024
      %21 = vsyncadd [#allocation3], %s20
      %s22 = sshll.u32 [#allocation2], 4
      %s23 = int_to_ptr.vmem [resolvable:$true] %s22
      %28 = dma.hbm_to_vmem [thread:$0]  %s0, 1024, %s23, [#allocation3], 64, 64, 4
    $region5: #{tpu_custom_call.1} parent=1 // pred_fallthru
      _
    // Predicated region
    $region6: #{tpu_custom_call.1} parent=1 // pred_check
      _
    $region7: #{tpu_custom_call.1} parent=1 // pred_check_branch
      %30 = sbr.rel (0) target = $region9
    $region8: #{tpu_custom_call.1} parent=1 // pred_region
      %s32 = ssub.s32 1024, 1024
      %33 = vsyncadd [#allocation6], %s32
      %s34 = sshll.u32 [#allocation5], 4
      %s35 = int_to_ptr.vmem [resolvable:$true] %s34
      %40 = dma.hbm_to_vmem [thread:$0]  %s1, 1024, %s35, [#allocation6], 64, 64, 4
    $region9: #{tpu_custom_call.1} parent=1 // pred_fallthru
      _
    // Predicated region
    $region10: #{tpu_custom_call.1} parent=1 // pred_check
      _
    $region11: #{tpu_custom_call.1} parent=1 // pred_check_branch
      %42 = sbr.rel (0) target = $region13
    $region12: #{tpu_custom_call.1} parent=1 // pred_region
      %s44 = ssub.s32 1024, 1024
      %45 = vsyncadd [#allocation6], %s44
      %s46 = sshll.u32 [#allocation7], 4
      %s47 = int_to_ptr.vmem [resolvable:$true] %s46
      %52 = dma.hbm_to_vmem [thread:$0]  %s2, 1024, %s47, [#allocation6], 64, 64, 4
    $region13: #{tpu_custom_call.1} parent=1 // pred_fallthru
      _
    // Predicated region
    $region14: #{tpu_custom_call.1} parent=1 // pred_check
      _
    $region15: #{tpu_custom_call.1} parent=1 // pred_check_branch
      %54 = sbr.rel (0) target = $region17
    $region16: #{tpu_custom_call.1} parent=1 // pred_region
      _
    $region17: #{tpu_custom_call.1} parent=1 // pred_fallthru
      _
    // Predicated region
    $region18: #{tpu_custom_call.1} parent=1 // pred_check
      _
    $region19: #{tpu_custom_call.1} parent=1 // pred_check_branch
      %56 = sbr.rel (0) target = $region21
    $region20: #{tpu_custom_call.1} parent=1 // pred_region
      %s58 = ssub.s32 1024, 1024
      %59 = vsyncadd [#allocation9], %s58
      %s60 = sshll.u32 [#allocation8], 4
      %s61 = int_to_ptr.vmem [resolvable:$true] %s60
      %66 = dma.hbm_to_vmem [thread:$0]  %s4, 1024, %s61, [#allocation9], 64, 64, 4
    $region21: #{tpu_custom_call.1} parent=1 // pred_fallthru
      _
    // Predicated region
    $region22: #{tpu_custom_call.1} parent=1 // pred_check
      _
    $region23: #{tpu_custom_call.1} parent=1 // pred_check_branch
      %68 = sbr.rel (0) target = $region25
    $region24: #{tpu_custom_call.1} parent=1 // pred_region
      _
    $region25: #{tpu_custom_call.1} parent=1 // pred_fallthru
      _
    // Predicated region
    $region26: #{tpu_custom_call.1} parent=1 // pred_check
      _
    $region27: #{tpu_custom_call.1} parent=1 // pred_check_branch
      %70 = sbr.rel (0) target = $region29
    $region28: #{tpu_custom_call.1} parent=1 // pred_region
      %s72 = ssub.s32 1024, 1024
      %73 = vsyncadd [#allocation9], %s72
      %s74 = sshll.u32 [#allocation10], 4
      %s75 = int_to_ptr.vmem [resolvable:$true] %s74
      %80 = dma.hbm_to_vmem [thread:$0]  %s6, 1024, %s75, [#allocation9], 64, 64, 4
    $region29: #{tpu_custom_call.1} parent=1 // pred_fallthru
      _
    // Predicated region
    $region30: #{tpu_custom_call.1} parent=1 // pred_check
      _
    $region31: #{tpu_custom_call.1} parent=1 // pred_check_branch
      %82 = sbr.rel (0) target = $region33
    $region32: #{tpu_custom_call.1} parent=1 // pred_region
      _
    $region33: #{tpu_custom_call.1} parent=1 // pred_fallthru
      _
    // Predicated region
    $region34: #{tpu_custom_call.1} parent=1 // pred_check
      _
    $region35: #{tpu_custom_call.1} parent=1 // pred_check_branch
      %84 = sbr.rel (0) target = $region37
    $region36: #{tpu_custom_call.1} parent=1 // pred_region
      %85 = dma.done [#allocation3], 1024
    $region37: #{tpu_custom_call.1} parent=1 // pred_fallthru
      _
    // Predicated region
    $region38: #{tpu_custom_call.1} parent=1 // pred_check
      _
    $region39: #{tpu_custom_call.1} parent=1 // pred_check_branch
      %87 = sbr.rel (0) target = $region41
    $region40: #{tpu_custom_call.1} parent=1 // pred_region
      %88 = dma.done [#allocation6], 1024
    $region41: #{tpu_custom_call.1} parent=1 // pred_fallthru
      _
    // Predicated region
    $region42: #{tpu_custom_call.1} parent=1 // pred_check
      _
    $region43: #{tpu_custom_call.1} parent=1 // pred_check_branch
      %90 = sbr.rel (0) target = $region45
    $region44: #{tpu_custom_call.1} parent=1 // pred_region
      %91 = dma.done [#allocation6], 1024
    $region45: #{tpu_custom_call.1} parent=1 // pred_fallthru
      _
    // Predicated region
    $region46: #{tpu_custom_call.1} parent=1 // pred_check
      _
    $region47: #{tpu_custom_call.1} parent=1 // pred_check_branch
      %93 = sbr.rel (0) target = $region49
    $region48: #{tpu_custom_call.1} parent=1 // pred_region
      %94 = dma.done [#allocation9], 1024
    $region49: #{tpu_custom_call.1} parent=1 // pred_fallthru
      _
    // Predicated region
    $region50: #{tpu_custom_call.1} parent=1 // pred_check
      _
    $region51: #{tpu_custom_call.1} parent=1 // pred_check_branch
      %96 = sbr.rel (0) target = $region53
    $region52: #{tpu_custom_call.1} parent=1 // pred_region
      %97 = dma.done [#allocation9], 1024
    $region53: #{tpu_custom_call.1} parent=1 // pred_fallthru
      _
    %v99 = vld [vmem:[#allocation2] sm:$0xf]
    %v100 = vld [vmem:[#allocation2 + $0x4] sm:$0xf]
    %v101 = vld [vmem:[#allocation2 + $0x8] sm:$0xf]
    %v102 = vld [vmem:[#allocation2 + $0xc] sm:$0xf]
    %v103 = vld [vmem:[#allocation2 + $0x10] sm:$0xf]
    %v104 = vld [vmem:[#allocation2 + $0x14] sm:$0xf]
    %v105 = vld [vmem:[#allocation2 + $0x18] sm:$0xf]
    %v106 = vld [vmem:[#allocation2 + $0x1c] sm:$0xf]
    %v107 = vld [vmem:[#allocation2 + $0x20] sm:$0xf]
    %v108 = vld [vmem:[#allocation2 + $0x24] sm:$0xf]
    %v109 = vld [vmem:[#allocation2 + $0x28] sm:$0xf]
    %v110 = vld [vmem:[#allocation2 + $0x2c] sm:$0xf]
    %v111 = vld [vmem:[#allocation2 + $0x30] sm:$0xf]
    %v112 = vld [vmem:[#allocation2 + $0x34] sm:$0xf]
    %v113 = vld [vmem:[#allocation2 + $0x38] sm:$0xf]
    %v114 = vld [vmem:[#allocation2 + $0x3c] sm:$0xf]
    %v115 = vld [vmem:[#allocation5] sm:$0xf]
    %v116 = vld [vmem:[#allocation5 + $0x4] sm:$0xf]
    %v117 = vld [vmem:[#allocation5 + $0x8] sm:$0xf]
    %v118 = vld [vmem:[#allocation5 + $0xc] sm:$0xf]
    %v119 = vld [vmem:[#allocation5 + $0x10] sm:$0xf]
    %v120 = vld [vmem:[#allocation5 + $0x14] sm:$0xf]
    %v121 = vld [vmem:[#allocation5 + $0x18] sm:$0xf]
    %v122 = vld [vmem:[#allocation5 + $0x1c] sm:$0xf]
    %v123 = vld [vmem:[#allocation5 + $0x20] sm:$0xf]
    %v124 = vld [vmem:[#allocation5 + $0x24] sm:$0xf]
    %v125 = vld [vmem:[#allocation5 + $0x28] sm:$0xf]
    %v126 = vld [vmem:[#allocation5 + $0x2c] sm:$0xf]
    %v127 = vld [vmem:[#allocation5 + $0x30] sm:$0xf]
    %v128 = vld [vmem:[#allocation5 + $0x34] sm:$0xf]
    %v129 = vld [vmem:[#allocation5 + $0x38] sm:$0xf]
    %v130 = vld [vmem:[#allocation5 + $0x3c] sm:$0xf]
    %v131 = vld [vmem:[#allocation7] sm:$0xf]
    %v132 = vld [vmem:[#allocation7 + $0x4] sm:$0xf]
    %v133 = vld [vmem:[#allocation7 + $0x8] sm:$0xf]
    %v134 = vld [vmem:[#allocation7 + $0xc] sm:$0xf]
    %v135 = vld [vmem:[#allocation7 + $0x10] sm:$0xf]
    %v136 = vld [vmem:[#allocation7 + $0x14] sm:$0xf]
    %v137 = vld [vmem:[#allocation7 + $0x18] sm:$0xf]
    %v138 = vld [vmem:[#allocation7 + $0x1c] sm:$0xf]
    %v139 = vld [vmem:[#allocation7 + $0x20] sm:$0xf]
    %v140 = vld [vmem:[#allocation7 + $0x24] sm:$0xf]
    %v141 = vld [vmem:[#allocation7 + $0x28] sm:$0xf]
    %v142 = vld [vmem:[#allocation7 + $0x2c] sm:$0xf]
    %v143 = vld [vmem:[#allocation7 + $0x30] sm:$0xf]
    %v144 = vld [vmem:[#allocation7 + $0x34] sm:$0xf]
    %v145 = vld [vmem:[#allocation7 + $0x38] sm:$0xf]
    %v146 = vld [vmem:[#allocation7 + $0x3c] sm:$0xf]
    %v163 = vunpack.c.l.b16 %v115
    %v164 = vunpack.c.l.b16 %v116
    %v165 = vunpack.c.l.b16 %v117
    %v166 = vunpack.c.l.b16 %v118
    %v167 = vunpack.c.l.b16 %v119
    %v168 = vunpack.c.l.b16 %v120
    %v169 = vunpack.c.l.b16 %v121
    %v170 = vunpack.c.l.b16 %v122
    %v171 = vunpack.c.l.b16 %v123
    %v172 = vunpack.c.l.b16 %v124
    %v173 = vunpack.c.l.b16 %v125
    %v174 = vunpack.c.l.b16 %v126
    %v175 = vunpack.c.l.b16 %v127
    %v176 = vunpack.c.l.b16 %v128
    %v177 = vunpack.c.l.b16 %v129
    %v178 = vunpack.c.l.b16 %v130
    %v179 = vpack.c.b16 %v164, %v163
    %v180 = vpack.c.b16 %v166, %v165
    %v181 = vpack.c.b16 %v168, %v167
    %v182 = vpack.c.b16 %v170, %v169
    %v183 = vpack.c.b16 %v172, %v171
    %v184 = vpack.c.b16 %v174, %v173
    %v185 = vpack.c.b16 %v176, %v175
    %v186 = vpack.c.b16 %v178, %v177
    %v211 = vunpack.c.l.b16 %v131
    %v212 = vunpack.c.l.b16 %v132
    %v213 = vunpack.c.l.b16 %v133
    %v214 = vunpack.c.l.b16 %v134
    %v215 = vunpack.c.l.b16 %v135
    %v216 = vunpack.c.l.b16 %v136
    %v217 = vunpack.c.l.b16 %v137
    %v218 = vunpack.c.l.b16 %v138
    %v219 = vunpack.c.l.b16 %v139
    %v220 = vunpack.c.l.b16 %v140
    %v221 = vunpack.c.l.b16 %v141
    %v222 = vunpack.c.l.b16 %v142
    %v223 = vunpack.c.l.b16 %v143
    %v224 = vunpack.c.l.b16 %v144
    %v225 = vunpack.c.l.b16 %v145
    %v226 = vunpack.c.l.b16 %v146
    %v227 = vpack.c.b16 %v212, %v211
    %v228 = vpack.c.b16 %v214, %v213
    %v229 = vpack.c.b16 %v216, %v215
    %v230 = vpack.c.b16 %v218, %v217
    %v231 = vpack.c.b16 %v220, %v219
    %v232 = vpack.c.b16 %v222, %v221
    %v233 = vpack.c.b16 %v224, %v223
    %v234 = vpack.c.b16 %v226, %v225
    %243 = vmatprep.subr.bf16.mxu0 0
    %244 = vmatpush1.bf16.msra.mxu0 %v234
    %245 = vmatprep.subr.bf16.mxu0 0
    %246 = vmatpush1.bf16.msra.mxu0 %v233
    %247 = vmatprep.subr.bf16.mxu0 0
    %248 = vmatpush1.bf16.msra.mxu0 %v232
    %249 = vmatprep.subr.bf16.mxu0 0
    %250 = vmatpush1.bf16.msra.mxu0 %v231
    %251 = vmatprep.subr.bf16.mxu0 0
    %252 = vmatpush1.bf16.msra.mxu0 %v230
    %253 = vmatprep.subr.bf16.mxu0 0
    %254 = vmatpush1.bf16.msra.mxu0 %v229
    %255 = vmatprep.subr.bf16.mxu0 0
    %256 = vmatpush1.bf16.msra.mxu0 %v228
    %257 = vmatprep.subr.bf16.mxu0 0
    %258 = vmatpush1.bf16.msra.mxu0 %v227
    %259 = vmatprep.subr.bf16.mxu0 0
    %260 = vmatpush2.bf16.msra.mxu0 0
    %261 = vmatprep.subr.bf16.mxu0 0
    %262 = vmatpush2.bf16.msra.mxu0 0
    %263 = vmatprep.subr.bf16.mxu0 0
    %264 = vmatpush2.bf16.msra.mxu0 0
    %265 = vmatprep.subr.bf16.mxu0 0
    %266 = vmatpush2.bf16.msra.mxu0 0
    %267 = vmatprep.subr.bf16.mxu0 0
    %268 = vmatpush2.bf16.msra.mxu0 0
    %269 = vmatprep.subr.bf16.mxu0 0
    %270 = vmatpush2.bf16.msra.mxu0 0
    %271 = vmatprep.subr.bf16.mxu0 0
    %272 = vmatpush2.bf16.msra.mxu0 0
    %273 = vmatprep.subr.bf16.mxu0 0
    %274 = vmatpush2.bf16.msra.mxu0 0
    %275 = vmatprep.mubr.bf16.mxu0 0
    %276 = vmatmul.mubr.bf16.gmra.mxu0 %v179
    %v277 = vpop.f32.mrf.mxu0
    %v278 = vadd.f32 0.0, %v277
    %v279 = vpop.f32.mrf.mxu0
    %v280 = vpop.f32.mrf.mxu0
    %v281 = vadd.f32 0.0, %v280
    %v282 = vpop.f32.mrf.mxu0
    %283 = vmatprep.mubr.bf16.mxu0 0
    %284 = vmatmul.mubr.bf16.gmra.mxu0 %v180
    %v285 = vpop.f32.mrf.mxu0
    %v286 = vadd.f32 0.0, %v285
    %v287 = vpop.f32.mrf.mxu0
    %v288 = vpop.f32.mrf.mxu0
    %v289 = vadd.f32 0.0, %v288
    %v290 = vpop.f32.mrf.mxu0
    %291 = vmatprep.mubr.bf16.mxu0 0
    %292 = vmatmul.mubr.bf16.gmra.mxu0 %v181
    %v293 = vpop.f32.mrf.mxu0
    %v294 = vadd.f32 0.0, %v293
    %v295 = vpop.f32.mrf.mxu0
    %v296 = vpop.f32.mrf.mxu0
    %v297 = vadd.f32 0.0, %v296
    %v298 = vpop.f32.mrf.mxu0
    %299 = vmatprep.mubr.bf16.mxu0 0
    %300 = vmatmul.mubr.bf16.gmra.mxu0 %v182
    %v301 = vpop.f32.mrf.mxu0
    %v302 = vadd.f32 0.0, %v301
    %v303 = vpop.f32.mrf.mxu0
    %v304 = vpop.f32.mrf.mxu0
    %v305 = vadd.f32 0.0, %v304
    %v306 = vpop.f32.mrf.mxu0
    %307 = vmatprep.mubr.bf16.mxu0 0
    %308 = vmatmul.mubr.bf16.gmra.mxu0 %v183
    %v309 = vpop.f32.mrf.mxu0
    %v310 = vadd.f32 0.0, %v309
    %v311 = vpop.f32.mrf.mxu0
    %v312 = vpop.f32.mrf.mxu0
    %v313 = vadd.f32 0.0, %v312
    %v314 = vpop.f32.mrf.mxu0
    %315 = vmatprep.mubr.bf16.mxu0 0
    %316 = vmatmul.mubr.bf16.gmra.mxu0 %v184
    %v317 = vpop.f32.mrf.mxu0
    %v318 = vadd.f32 0.0, %v317
    %v319 = vpop.f32.mrf.mxu0
    %v320 = vpop.f32.mrf.mxu0
    %v321 = vadd.f32 0.0, %v320
    %v322 = vpop.f32.mrf.mxu0
    %323 = vmatprep.mubr.bf16.mxu0 0
    %324 = vmatmul.mubr.bf16.gmra.mxu0 %v185
    %v325 = vpop.f32.mrf.mxu0
    %v326 = vadd.f32 0.0, %v325
    %v327 = vpop.f32.mrf.mxu0
    %v328 = vpop.f32.mrf.mxu0
    %v329 = vadd.f32 0.0, %v328
    %v330 = vpop.f32.mrf.mxu0
    %331 = vmatprep.mubr.bf16.mxu0 0
    %332 = vmatmul.mubr.bf16.gmra.mxu0 %v186
    %v333 = vpop.f32.mrf.mxu0
    %v334 = vadd.f32 0.0, %v333
    %v335 = vpop.f32.mrf.mxu0
    %v336 = vpop.f32.mrf.mxu0
    %v337 = vadd.f32 0.0, %v336
    %v338 = vpop.f32.mrf.mxu0
    %339 = vdwg.mxu0
    %v340 = vpack.c.bf16 %v281, %v278
    %v341 = vpack.c.bf16 %v289, %v286
    %v342 = vpack.c.bf16 %v297, %v294
    %v343 = vpack.c.bf16 %v305, %v302
    %v344 = vpack.c.bf16 %v313, %v310
    %v345 = vpack.c.bf16 %v321, %v318
    %v346 = vpack.c.bf16 %v329, %v326
    %v347 = vpack.c.bf16 %v337, %v334
    %v348 = vld [vmem:[%s3] sm:$0x1]
    %v350 = vlaneseq
    %v351 = vshrl.u32 %v350, 7
    %v352 = vsub.s32 0, %v351
    %v353 = vrot.slane %v348, %v352
    %v371 = vunpack.c.l.b16 %v99
    %v372 = vunpack.c.l.b16 %v100
    %v373 = vunpack.c.l.b16 %v101
    %v374 = vunpack.c.l.b16 %v102
    %v375 = vunpack.c.l.b16 %v103
    %v376 = vunpack.c.l.b16 %v104
    %v377 = vunpack.c.l.b16 %v105
    %v378 = vunpack.c.l.b16 %v106
    %v379 = vunpack.c.l.b16 %v107
    %v380 = vunpack.c.l.b16 %v108
    %v381 = vunpack.c.l.b16 %v109
    %v382 = vunpack.c.l.b16 %v110
    %v383 = vunpack.c.l.b16 %v111
    %v384 = vunpack.c.l.b16 %v112
    %v385 = vunpack.c.l.b16 %v113
    %v386 = vunpack.c.l.b16 %v114
    %v387 = vpack.c.b16 %v372, %v371
    %v388 = vpack.c.b16 %v374, %v373
    %v389 = vpack.c.b16 %v376, %v375
    %v390 = vpack.c.b16 %v378, %v377
    %v391 = vpack.c.b16 %v380, %v379
    %v392 = vpack.c.b16 %v382, %v381
    %v393 = vpack.c.b16 %v384, %v383
    %v394 = vpack.c.b16 %v386, %v385
    %403 = vmatprep.subr.bf16.mxu0 0
    %404 = vmatpush1.bf16.msra.mxu0 %v347
    %405 = vmatprep.subr.bf16.mxu0 0
    %406 = vmatpush1.bf16.msra.mxu0 %v346
    %407 = vmatprep.subr.bf16.mxu0 0
    %408 = vmatpush1.bf16.msra.mxu0 %v345
    %409 = vmatprep.subr.bf16.mxu0 0
    %410 = vmatpush1.bf16.msra.mxu0 %v344
    %411 = vmatprep.subr.bf16.mxu0 0
    %412 = vmatpush1.bf16.msra.mxu0 %v343
    %413 = vmatprep.subr.bf16.mxu0 0
    %414 = vmatpush1.bf16.msra.mxu0 %v342
    %415 = vmatprep.subr.bf16.mxu0 0
    %416 = vmatpush1.bf16.msra.mxu0 %v341
    %417 = vmatprep.subr.bf16.mxu0 0
    %418 = vmatpush1.bf16.msra.mxu0 %v340
    %419 = vmatprep.subr.bf16.mxu0 0
    %420 = vmatpush2.bf16.msra.mxu0 0
    %421 = vmatprep.subr.bf16.mxu0 0
    %422 = vmatpush2.bf16.msra.mxu0 0
    %423 = vmatprep.subr.bf16.mxu0 0
    %424 = vmatpush2.bf16.msra.mxu0 0
    %425 = vmatprep.subr.bf16.mxu0 0
    %426 = vmatpush2.bf16.msra.mxu0 0
    %427 = vmatprep.subr.bf16.mxu0 0
    %428 = vmatpush2.bf16.msra.mxu0 0
    %429 = vmatprep.subr.bf16.mxu0 0
    %430 = vmatpush2.bf16.msra.mxu0 0
    %431 = vmatprep.subr.bf16.mxu0 0
    %432 = vmatpush2.bf16.msra.mxu0 0
    %433 = vmatprep.subr.bf16.mxu0 0
    %434 = vmatpush2.bf16.msra.mxu0 0
    %435 = vmatprep.mubr.bf16.mxu0 0
    %436 = vmatmul.mubr.bf16.gmra.mxu0 %v387
    %v437 = vpop.f32.mrf.mxu0
    %v438 = vadd.f32 %v353, %v437
    %v439 = vpop.f32.mrf.mxu0
    %v440 = vpop.f32.mrf.mxu0
    %v441 = vadd.f32 %v353, %v440
    %v442 = vpop.f32.mrf.mxu0
    %443 = vmatprep.mubr.bf16.mxu0 0
    %444 = vmatmul.mubr.bf16.gmra.mxu0 %v388
    %v445 = vpop.f32.mrf.mxu0
    %v446 = vadd.f32 %v353, %v445
    %v447 = vpop.f32.mrf.mxu0
    %v448 = vpop.f32.mrf.mxu0
    %v449 = vadd.f32 %v353, %v448
    %v450 = vpop.f32.mrf.mxu0
    %451 = vmatprep.mubr.bf16.mxu0 0
    %452 = vmatmul.mubr.bf16.gmra.mxu0 %v389
    %v453 = vpop.f32.mrf.mxu0
    %v454 = vadd.f32 %v353, %v453
    %v455 = vpop.f32.mrf.mxu0
    %v456 = vpop.f32.mrf.mxu0
    %v457 = vadd.f32 %v353, %v456
    %v458 = vpop.f32.mrf.mxu0
    %459 = vmatprep.mubr.bf16.mxu0 0
    %460 = vmatmul.mubr.bf16.gmra.mxu0 %v390
    %v461 = vpop.f32.mrf.mxu0
    %v462 = vadd.f32 %v353, %v461
    %v463 = vpop.f32.mrf.mxu0
    %v464 = vpop.f32.mrf.mxu0
    %v465 = vadd.f32 %v353, %v464
    %v466 = vpop.f32.mrf.mxu0
    %467 = vmatprep.mubr.bf16.mxu0 0
    %468 = vmatmul.mubr.bf16.gmra.mxu0 %v391
    %v469 = vpop.f32.mrf.mxu0
    %v470 = vadd.f32 %v353, %v469
    %v471 = vpop.f32.mrf.mxu0
    %v472 = vpop.f32.mrf.mxu0
    %v473 = vadd.f32 %v353, %v472
    %v474 = vpop.f32.mrf.mxu0
    %475 = vmatprep.mubr.bf16.mxu0 0
    %476 = vmatmul.mubr.bf16.gmra.mxu0 %v392
    %v477 = vpop.f32.mrf.mxu0
    %v478 = vadd.f32 %v353, %v477
    %v479 = vpop.f32.mrf.mxu0
    %v480 = vpop.f32.mrf.mxu0
    %v481 = vadd.f32 %v353, %v480
    %v482 = vpop.f32.mrf.mxu0
    %483 = vmatprep.mubr.bf16.mxu0 0
    %484 = vmatmul.mubr.bf16.gmra.mxu0 %v393
    %v485 = vpop.f32.mrf.mxu0
    %v486 = vadd.f32 %v353, %v485
    %v487 = vpop.f32.mrf.mxu0
    %v488 = vpop.f32.mrf.mxu0
    %v489 = vadd.f32 %v353, %v488
    %v490 = vpop.f32.mrf.mxu0
    %491 = vmatprep.mubr.bf16.mxu0 0
    %492 = vmatmul.mubr.bf16.gmra.mxu0 %v394
    %v493 = vpop.f32.mrf.mxu0
    %v494 = vadd.f32 %v353, %v493
    %v495 = vpop.f32.mrf.mxu0
    %v496 = vpop.f32.mrf.mxu0
    %v497 = vadd.f32 %v353, %v496
    %v498 = vpop.f32.mrf.mxu0
    %499 = vdwg.mxu0
    %v500 = vxor.u32 %v438, 2147483648
    %v501 = vxor.u32 %v441, 2147483648
    %v502 = vxor.u32 %v446, 2147483648
    %v503 = vxor.u32 %v449, 2147483648
    %v504 = vxor.u32 %v454, 2147483648
    %v505 = vxor.u32 %v457, 2147483648
    %v506 = vxor.u32 %v462, 2147483648
    %v507 = vxor.u32 %v465, 2147483648
    %v508 = vxor.u32 %v470, 2147483648
    %v509 = vxor.u32 %v473, 2147483648
    %v510 = vxor.u32 %v478, 2147483648
    %v511 = vxor.u32 %v481, 2147483648
    %v512 = vxor.u32 %v486, 2147483648
    %v513 = vxor.u32 %v489, 2147483648
    %v514 = vxor.u32 %v494, 2147483648
    %v515 = vxor.u32 %v497, 2147483648
    %v516 = vmul.f32 %v500, 1.442695
    %v517 = vpow.pop %v516
    %v518 = vmul.f32 %v501, 1.442695
    %v519 = vpow.pop %v518
    %v520 = vmul.f32 %v502, 1.442695
    %v521 = vpow.pop %v520
    %v522 = vmul.f32 %v503, 1.442695
    %v523 = vpow.pop %v522
    %v524 = vmul.f32 %v504, 1.442695
    %v525 = vpow.pop %v524
    %v526 = vmul.f32 %v505, 1.442695
    %v527 = vpow.pop %v526
    %v528 = vmul.f32 %v506, 1.442695
    %v529 = vpow.pop %v528
    %v530 = vmul.f32 %v507, 1.442695
    %v531 = vpow.pop %v530
    %v532 = vmul.f32 %v508, 1.442695
    %v533 = vpow.pop %v532
    %v534 = vmul.f32 %v509, 1.442695
    %v535 = vpow.pop %v534
    %v536 = vmul.f32 %v510, 1.442695
    %v537 = vpow.pop %v536
    %v538 = vmul.f32 %v511, 1.442695
    %v539 = vpow.pop %v538
    %v540 = vmul.f32 %v512, 1.442695
    %v541 = vpow.pop %v540
    %v542 = vmul.f32 %v513, 1.442695
    %v543 = vpow.pop %v542
    %v544 = vmul.f32 %v514, 1.442695
    %v545 = vpow.pop %v544
    %v546 = vmul.f32 %v515, 1.442695
    %v547 = vpow.pop %v546
    %v548 = vadd.f32 %v517, 1.0
    %v549 = vadd.f32 %v519, 1.0
    %v550 = vadd.f32 %v521, 1.0
    %v551 = vadd.f32 %v523, 1.0
    %v552 = vadd.f32 %v525, 1.0
    %v553 = vadd.f32 %v527, 1.0
    %v554 = vadd.f32 %v529, 1.0
    %v555 = vadd.f32 %v531, 1.0
    %v556 = vadd.f32 %v533, 1.0
    %v557 = vadd.f32 %v535, 1.0
    %v558 = vadd.f32 %v537, 1.0
    %v559 = vadd.f32 %v539, 1.0
    %v560 = vadd.f32 %v541, 1.0
    %v561 = vadd.f32 %v543, 1.0
    %v562 = vadd.f32 %v545, 1.0
    %v563 = vadd.f32 %v547, 1.0
    %v564 = vrcp.pop %v548
    %v565 = vmul.f32 1.0, %v564
    %v566 = vrcp.pop %v549
    %v567 = vmul.f32 1.0, %v566
    %v568 = vrcp.pop %v550
    %v569 = vmul.f32 1.0, %v568
    %v570 = vrcp.pop %v551
    %v571 = vmul.f32 1.0, %v570
    %v572 = vrcp.pop %v552
    %v573 = vmul.f32 1.0, %v572
    %v574 = vrcp.pop %v553
    %v575 = vmul.f32 1.0, %v574
    %v576 = vrcp.pop %v554
    %v577 = vmul.f32 1.0, %v576
    %v578 = vrcp.pop %v555
    %v579 = vmul.f32 1.0, %v578
    %v580 = vrcp.pop %v556
    %v581 = vmul.f32 1.0, %v580
    %v582 = vrcp.pop %v557
    %v583 = vmul.f32 1.0, %v582
    %v584 = vrcp.pop %v558
    %v585 = vmul.f32 1.0, %v584
    %v586 = vrcp.pop %v559
    %v587 = vmul.f32 1.0, %v586
    %v588 = vrcp.pop %v560
    %v589 = vmul.f32 1.0, %v588
    %v590 = vrcp.pop %v561
    %v591 = vmul.f32 1.0, %v590
    %v592 = vrcp.pop %v562
    %v593 = vmul.f32 1.0, %v592
    %v594 = vrcp.pop %v563
    %v595 = vmul.f32 1.0, %v594
    %v596 = vmul.f32 %v438, %v565
    %v597 = vmul.f32 %v441, %v567
    %v598 = vmul.f32 %v446, %v569
    %v599 = vmul.f32 %v449, %v571
    %v600 = vmul.f32 %v454, %v573
    %v601 = vmul.f32 %v457, %v575
    %v602 = vmul.f32 %v462, %v577
    %v603 = vmul.f32 %v465, %v579
    %v604 = vmul.f32 %v470, %v581
    %v605 = vmul.f32 %v473, %v583
    %v606 = vmul.f32 %v478, %v585
    %v607 = vmul.f32 %v481, %v587
    %v608 = vmul.f32 %v486, %v589
    %v609 = vmul.f32 %v489, %v591
    %v610 = vmul.f32 %v494, %v593
    %v611 = vmul.f32 %v497, %v595
    %v612 = vpack.c.bf16 %v597, %v596
    %v613 = vpack.c.bf16 %v599, %v598
    %v614 = vpack.c.bf16 %v601, %v600
    %v615 = vpack.c.bf16 %v603, %v602
    %v616 = vpack.c.bf16 %v605, %v604
    %v617 = vpack.c.bf16 %v607, %v606
    %v618 = vpack.c.bf16 %v609, %v608
    %v619 = vpack.c.bf16 %v611, %v610
    %v620 = vld [vmem:[#allocation8] sm:$0xf]
    %v621 = vld [vmem:[#allocation8 + $0x4] sm:$0xf]
    %v622 = vld [vmem:[#allocation8 + $0x8] sm:$0xf]
    %v623 = vld [vmem:[#allocation8 + $0xc] sm:$0xf]
    %v624 = vld [vmem:[#allocation8 + $0x10] sm:$0xf]
    %v625 = vld [vmem:[#allocation8 + $0x14] sm:$0xf]
    %v626 = vld [vmem:[#allocation8 + $0x18] sm:$0xf]
    %v627 = vld [vmem:[#allocation8 + $0x1c] sm:$0xf]
    %v628 = vld [vmem:[#allocation8 + $0x20] sm:$0xf]
    %v629 = vld [vmem:[#allocation8 + $0x24] sm:$0xf]
    %v630 = vld [vmem:[#allocation8 + $0x28] sm:$0xf]
    %v631 = vld [vmem:[#allocation8 + $0x2c] sm:$0xf]
    %v632 = vld [vmem:[#allocation8 + $0x30] sm:$0xf]
    %v633 = vld [vmem:[#allocation8 + $0x34] sm:$0xf]
    %v634 = vld [vmem:[#allocation8 + $0x38] sm:$0xf]
    %v635 = vld [vmem:[#allocation8 + $0x3c] sm:$0xf]
    %v652 = vunpack.c.l.b16 %v620
    %v653 = vunpack.c.l.b16 %v621
    %v654 = vunpack.c.l.b16 %v622
    %v655 = vunpack.c.l.b16 %v623
    %v656 = vunpack.c.l.b16 %v624
    %v657 = vunpack.c.l.b16 %v625
    %v658 = vunpack.c.l.b16 %v626
    %v659 = vunpack.c.l.b16 %v627
    %v660 = vunpack.c.l.b16 %v628
    %v661 = vunpack.c.l.b16 %v629
    %v662 = vunpack.c.l.b16 %v630
    %v663 = vunpack.c.l.b16 %v631
    %v664 = vunpack.c.l.b16 %v632
    %v665 = vunpack.c.l.b16 %v633
    %v666 = vunpack.c.l.b16 %v634
    %v667 = vunpack.c.l.b16 %v635
    %v668 = vpack.c.b16 %v653, %v652
    %v669 = vpack.c.b16 %v655, %v654
    %v670 = vpack.c.b16 %v657, %v656
    %v671 = vpack.c.b16 %v659, %v658
    %v672 = vpack.c.b16 %v661, %v660
    %v673 = vpack.c.b16 %v663, %v662
    %v674 = vpack.c.b16 %v665, %v664
    %v675 = vpack.c.b16 %v667, %v666
    %684 = vmatprep.subr.bf16.mxu0 0
    %685 = vmatpush1.bf16.msra.mxu0 %v675
    %686 = vmatprep.subr.bf16.mxu0 0
    %687 = vmatpush1.bf16.msra.mxu0 %v674
    %688 = vmatprep.subr.bf16.mxu0 0
    %689 = vmatpush1.bf16.msra.mxu0 %v673
    %690 = vmatprep.subr.bf16.mxu0 0
    %691 = vmatpush1.bf16.msra.mxu0 %v672
    %692 = vmatprep.subr.bf16.mxu0 0
    %693 = vmatpush1.bf16.msra.mxu0 %v671
    %694 = vmatprep.subr.bf16.mxu0 0
    %695 = vmatpush1.bf16.msra.mxu0 %v670
    %696 = vmatprep.subr.bf16.mxu0 0
    %697 = vmatpush1.bf16.msra.mxu0 %v669
    %698 = vmatprep.subr.bf16.mxu0 0
    %699 = vmatpush1.bf16.msra.mxu0 %v668
    %700 = vmatprep.subr.bf16.mxu0 0
    %701 = vmatpush2.bf16.msra.mxu0 0
    %702 = vmatprep.subr.bf16.mxu0 0
    %703 = vmatpush2.bf16.msra.mxu0 0
    %704 = vmatprep.subr.bf16.mxu0 0
    %705 = vmatpush2.bf16.msra.mxu0 0
    %706 = vmatprep.subr.bf16.mxu0 0
    %707 = vmatpush2.bf16.msra.mxu0 0
    %708 = vmatprep.subr.bf16.mxu0 0
    %709 = vmatpush2.bf16.msra.mxu0 0
    %710 = vmatprep.subr.bf16.mxu0 0
    %711 = vmatpush2.bf16.msra.mxu0 0
    %712 = vmatprep.subr.bf16.mxu0 0
    %713 = vmatpush2.bf16.msra.mxu0 0
    %714 = vmatprep.subr.bf16.mxu0 0
    %715 = vmatpush2.bf16.msra.mxu0 0
    %716 = vmatprep.mubr.bf16.mxu0 0
    %717 = vmatmul.mubr.bf16.gmra.mxu0 %v612
    %v718 = vpop.f32.mrf.mxu0
    %v719 = vadd.f32 0.0, %v718
    %v720 = vpop.f32.mrf.mxu0
    %v721 = vpop.f32.mrf.mxu0
    %v722 = vadd.f32 0.0, %v721
    %v723 = vpop.f32.mrf.mxu0
    %724 = vmatprep.mubr.bf16.mxu0 0
    %725 = vmatmul.mubr.bf16.gmra.mxu0 %v613
    %v726 = vpop.f32.mrf.mxu0
    %v727 = vadd.f32 0.0, %v726
    %v728 = vpop.f32.mrf.mxu0
    %v729 = vpop.f32.mrf.mxu0
    %v730 = vadd.f32 0.0, %v729
    %v731 = vpop.f32.mrf.mxu0
    %732 = vmatprep.mubr.bf16.mxu0 0
    %733 = vmatmul.mubr.bf16.gmra.mxu0 %v614
    %v734 = vpop.f32.mrf.mxu0
    %v735 = vadd.f32 0.0, %v734
    %v736 = vpop.f32.mrf.mxu0
    %v737 = vpop.f32.mrf.mxu0
    %v738 = vadd.f32 0.0, %v737
    %v739 = vpop.f32.mrf.mxu0
    %740 = vmatprep.mubr.bf16.mxu0 0
    %741 = vmatmul.mubr.bf16.gmra.mxu0 %v615
    %v742 = vpop.f32.mrf.mxu0
    %v743 = vadd.f32 0.0, %v742
    %v744 = vpop.f32.mrf.mxu0
    %v745 = vpop.f32.mrf.mxu0
    %v746 = vadd.f32 0.0, %v745
    %v747 = vpop.f32.mrf.mxu0
    %748 = vmatprep.mubr.bf16.mxu0 0
    %749 = vmatmul.mubr.bf16.gmra.mxu0 %v616
    %v750 = vpop.f32.mrf.mxu0
    %v751 = vadd.f32 0.0, %v750
    %v752 = vpop.f32.mrf.mxu0
    %v753 = vpop.f32.mrf.mxu0
    %v754 = vadd.f32 0.0, %v753
    %v755 = vpop.f32.mrf.mxu0
    %756 = vmatprep.mubr.bf16.mxu0 0
    %757 = vmatmul.mubr.bf16.gmra.mxu0 %v617
    %v758 = vpop.f32.mrf.mxu0
    %v759 = vadd.f32 0.0, %v758
    %v760 = vpop.f32.mrf.mxu0
    %v761 = vpop.f32.mrf.mxu0
    %v762 = vadd.f32 0.0, %v761
    %v763 = vpop.f32.mrf.mxu0
    %764 = vmatprep.mubr.bf16.mxu0 0
    %765 = vmatmul.mubr.bf16.gmra.mxu0 %v618
    %v766 = vpop.f32.mrf.mxu0
    %v767 = vadd.f32 0.0, %v766
    %v768 = vpop.f32.mrf.mxu0
    %v769 = vpop.f32.mrf.mxu0
    %v770 = vadd.f32 0.0, %v769
    %v771 = vpop.f32.mrf.mxu0
    %772 = vmatprep.mubr.bf16.mxu0 0
    %773 = vmatmul.mubr.bf16.gmra.mxu0 %v619
    %v774 = vpop.f32.mrf.mxu0
    %v775 = vadd.f32 0.0, %v774
    %v776 = vpop.f32.mrf.mxu0
    %v777 = vpop.f32.mrf.mxu0
    %v778 = vadd.f32 0.0, %v777
    %v779 = vpop.f32.mrf.mxu0
    %780 = vdwg.mxu0
    %v781 = vpack.c.bf16 %v722, %v719
    %v782 = vpack.c.bf16 %v730, %v727
    %v783 = vpack.c.bf16 %v738, %v735
    %v784 = vpack.c.bf16 %v746, %v743
    %v785 = vpack.c.bf16 %v754, %v751
    %v786 = vpack.c.bf16 %v762, %v759
    %v787 = vpack.c.bf16 %v770, %v767
    %v788 = vpack.c.bf16 %v778, %v775
    %v789 = vld [vmem:[%s5] sm:$0x1]
    %v791 = vlaneseq
    %v792 = vshrl.u32 %v791, 7
    %v793 = vsub.s32 0, %v792
    %v794 = vrot.slane %v789, %v793
    %796 = vmatprep.subr.bf16.mxu0 0
    %797 = vmatpush1.bf16.msra.mxu0 %v788
    %798 = vmatprep.subr.bf16.mxu0 0
    %799 = vmatpush1.bf16.msra.mxu0 %v787
    %800 = vmatprep.subr.bf16.mxu0 0
    %801 = vmatpush1.bf16.msra.mxu0 %v786
    %802 = vmatprep.subr.bf16.mxu0 0
    %803 = vmatpush1.bf16.msra.mxu0 %v785
    %804 = vmatprep.subr.bf16.mxu0 0
    %805 = vmatpush1.bf16.msra.mxu0 %v784
    %806 = vmatprep.subr.bf16.mxu0 0
    %807 = vmatpush1.bf16.msra.mxu0 %v783
    %808 = vmatprep.subr.bf16.mxu0 0
    %809 = vmatpush1.bf16.msra.mxu0 %v782
    %810 = vmatprep.subr.bf16.mxu0 0
    %811 = vmatpush1.bf16.msra.mxu0 %v781
    %812 = vmatprep.subr.bf16.mxu0 0
    %813 = vmatpush2.bf16.msra.mxu0 0
    %814 = vmatprep.subr.bf16.mxu0 0
    %815 = vmatpush2.bf16.msra.mxu0 0
    %816 = vmatprep.subr.bf16.mxu0 0
    %817 = vmatpush2.bf16.msra.mxu0 0
    %818 = vmatprep.subr.bf16.mxu0 0
    %819 = vmatpush2.bf16.msra.mxu0 0
    %820 = vmatprep.subr.bf16.mxu0 0
    %821 = vmatpush2.bf16.msra.mxu0 0
    %822 = vmatprep.subr.bf16.mxu0 0
    %823 = vmatpush2.bf16.msra.mxu0 0
    %824 = vmatprep.subr.bf16.mxu0 0
    %825 = vmatpush2.bf16.msra.mxu0 0
    %826 = vmatprep.subr.bf16.mxu0 0
    %827 = vmatpush2.bf16.msra.mxu0 0
    %828 = vmatprep.mubr.bf16.mxu0 0
    %829 = vmatmul.mubr.bf16.gmra.mxu0 %v387
    %v830 = vpop.f32.mrf.mxu0
    %v831 = vadd.f32 %v794, %v830
    %v832 = vpop.f32.mrf.mxu0
    %v833 = vpop.f32.mrf.mxu0
    %v834 = vadd.f32 %v794, %v833
    %v835 = vpop.f32.mrf.mxu0
    %836 = vmatprep.mubr.bf16.mxu0 0
    %837 = vmatmul.mubr.bf16.gmra.mxu0 %v388
    %v838 = vpop.f32.mrf.mxu0
    %v839 = vadd.f32 %v794, %v838
    %v840 = vpop.f32.mrf.mxu0
    %v841 = vpop.f32.mrf.mxu0
    %v842 = vadd.f32 %v794, %v841
    %v843 = vpop.f32.mrf.mxu0
    %844 = vmatprep.mubr.bf16.mxu0 0
    %845 = vmatmul.mubr.bf16.gmra.mxu0 %v389
    %v846 = vpop.f32.mrf.mxu0
    %v847 = vadd.f32 %v794, %v846
    %v848 = vpop.f32.mrf.mxu0
    %v849 = vpop.f32.mrf.mxu0
    %v850 = vadd.f32 %v794, %v849
    %v851 = vpop.f32.mrf.mxu0
    %852 = vmatprep.mubr.bf16.mxu0 0
    %853 = vmatmul.mubr.bf16.gmra.mxu0 %v390
    %v854 = vpop.f32.mrf.mxu0
    %v855 = vadd.f32 %v794, %v854
    %v856 = vpop.f32.mrf.mxu0
    %v857 = vpop.f32.mrf.mxu0
    %v858 = vadd.f32 %v794, %v857
    %v859 = vpop.f32.mrf.mxu0
    %860 = vmatprep.mubr.bf16.mxu0 0
    %861 = vmatmul.mubr.bf16.gmra.mxu0 %v391
    %v862 = vpop.f32.mrf.mxu0
    %v863 = vadd.f32 %v794, %v862
    %v864 = vpop.f32.mrf.mxu0
    %v865 = vpop.f32.mrf.mxu0
    %v866 = vadd.f32 %v794, %v865
    %v867 = vpop.f32.mrf.mxu0
    %868 = vmatprep.mubr.bf16.mxu0 0
    %869 = vmatmul.mubr.bf16.gmra.mxu0 %v392
    %v870 = vpop.f32.mrf.mxu0
    %v871 = vadd.f32 %v794, %v870
    %v872 = vpop.f32.mrf.mxu0
    %v873 = vpop.f32.mrf.mxu0
    %v874 = vadd.f32 %v794, %v873
    %v875 = vpop.f32.mrf.mxu0
    %876 = vmatprep.mubr.bf16.mxu0 0
    %877 = vmatmul.mubr.bf16.gmra.mxu0 %v393
    %v878 = vpop.f32.mrf.mxu0
    %v879 = vadd.f32 %v794, %v878
    %v880 = vpop.f32.mrf.mxu0
    %v881 = vpop.f32.mrf.mxu0
    %v882 = vadd.f32 %v794, %v881
    %v883 = vpop.f32.mrf.mxu0
    %884 = vmatprep.mubr.bf16.mxu0 0
    %885 = vmatmul.mubr.bf16.gmra.mxu0 %v394
    %v886 = vpop.f32.mrf.mxu0
    %v887 = vadd.f32 %v794, %v886
    %v888 = vpop.f32.mrf.mxu0
    %v889 = vpop.f32.mrf.mxu0
    %v890 = vadd.f32 %v794, %v889
    %v891 = vpop.f32.mrf.mxu0
    %892 = vdwg.mxu0
    %v893 = vxor.u32 %v831, 2147483648
    %v894 = vxor.u32 %v834, 2147483648
    %v895 = vxor.u32 %v839, 2147483648
    %v896 = vxor.u32 %v842, 2147483648
    %v897 = vxor.u32 %v847, 2147483648
    %v898 = vxor.u32 %v850, 2147483648
    %v899 = vxor.u32 %v855, 2147483648
    %v900 = vxor.u32 %v858, 2147483648
    %v901 = vxor.u32 %v863, 2147483648
    %v902 = vxor.u32 %v866, 2147483648
    %v903 = vxor.u32 %v871, 2147483648
    %v904 = vxor.u32 %v874, 2147483648
    %v905 = vxor.u32 %v879, 2147483648
    %v906 = vxor.u32 %v882, 2147483648
    %v907 = vxor.u32 %v887, 2147483648
    %v908 = vxor.u32 %v890, 2147483648
    %v909 = vmul.f32 %v893, 1.442695
    %v910 = vpow.pop %v909
    %v911 = vmul.f32 %v894, 1.442695
    %v912 = vpow.pop %v911
    %v913 = vmul.f32 %v895, 1.442695
    %v914 = vpow.pop %v913
    %v915 = vmul.f32 %v896, 1.442695
    %v916 = vpow.pop %v915
    %v917 = vmul.f32 %v897, 1.442695
    %v918 = vpow.pop %v917
    %v919 = vmul.f32 %v898, 1.442695
    %v920 = vpow.pop %v919
    %v921 = vmul.f32 %v899, 1.442695
    %v922 = vpow.pop %v921
    %v923 = vmul.f32 %v900, 1.442695
    %v924 = vpow.pop %v923
    %v925 = vmul.f32 %v901, 1.442695
    %v926 = vpow.pop %v925
    %v927 = vmul.f32 %v902, 1.442695
    %v928 = vpow.pop %v927
    %v929 = vmul.f32 %v903, 1.442695
    %v930 = vpow.pop %v929
    %v931 = vmul.f32 %v904, 1.442695
    %v932 = vpow.pop %v931
    %v933 = vmul.f32 %v905, 1.442695
    %v934 = vpow.pop %v933
    %v935 = vmul.f32 %v906, 1.442695
    %v936 = vpow.pop %v935
    %v937 = vmul.f32 %v907, 1.442695
    %v938 = vpow.pop %v937
    %v939 = vmul.f32 %v908, 1.442695
    %v940 = vpow.pop %v939
    %v941 = vadd.f32 %v910, 1.0
    %v942 = vadd.f32 %v912, 1.0
    %v943 = vadd.f32 %v914, 1.0
    %v944 = vadd.f32 %v916, 1.0
    %v945 = vadd.f32 %v918, 1.0
    %v946 = vadd.f32 %v920, 1.0
    %v947 = vadd.f32 %v922, 1.0
    %v948 = vadd.f32 %v924, 1.0
    %v949 = vadd.f32 %v926, 1.0
    %v950 = vadd.f32 %v928, 1.0
    %v951 = vadd.f32 %v930, 1.0
    %v952 = vadd.f32 %v932, 1.0
    %v953 = vadd.f32 %v934, 1.0
    %v954 = vadd.f32 %v936, 1.0
    %v955 = vadd.f32 %v938, 1.0
    %v956 = vadd.f32 %v940, 1.0
    %v957 = vrcp.pop %v941
    %v958 = vmul.f32 1.0, %v957
    %v959 = vrcp.pop %v942
    %v960 = vmul.f32 1.0, %v959
    %v961 = vrcp.pop %v943
    %v962 = vmul.f32 1.0, %v961
    %v963 = vrcp.pop %v944
    %v964 = vmul.f32 1.0, %v963
    %v965 = vrcp.pop %v945
    %v966 = vmul.f32 1.0, %v965
    %v967 = vrcp.pop %v946
    %v968 = vmul.f32 1.0, %v967
    %v969 = vrcp.pop %v947
    %v970 = vmul.f32 1.0, %v969
    %v971 = vrcp.pop %v948
    %v972 = vmul.f32 1.0, %v971
    %v973 = vrcp.pop %v949
    %v974 = vmul.f32 1.0, %v973
    %v975 = vrcp.pop %v950
    %v976 = vmul.f32 1.0, %v975
    %v977 = vrcp.pop %v951
    %v978 = vmul.f32 1.0, %v977
    %v979 = vrcp.pop %v952
    %v980 = vmul.f32 1.0, %v979
    %v981 = vrcp.pop %v953
    %v982 = vmul.f32 1.0, %v981
    %v983 = vrcp.pop %v954
    %v984 = vmul.f32 1.0, %v983
    %v985 = vrcp.pop %v955
    %v986 = vmul.f32 1.0, %v985
    %v987 = vrcp.pop %v956
    %v988 = vmul.f32 1.0, %v987
    %v989 = vmul.f32 %v831, %v958
    %v990 = vmul.f32 %v834, %v960
    %v991 = vmul.f32 %v839, %v962
    %v992 = vmul.f32 %v842, %v964
    %v993 = vmul.f32 %v847, %v966
    %v994 = vmul.f32 %v850, %v968
    %v995 = vmul.f32 %v855, %v970
    %v996 = vmul.f32 %v858, %v972
    %v997 = vmul.f32 %v863, %v974
    %v998 = vmul.f32 %v866, %v976
    %v999 = vmul.f32 %v871, %v978
    %v1000 = vmul.f32 %v874, %v980
    %v1001 = vmul.f32 %v879, %v982
    %v1002 = vmul.f32 %v882, %v984
    %v1003 = vmul.f32 %v887, %v986
    %v1004 = vmul.f32 %v890, %v988
    %v1005 = vpack.c.bf16 %v990, %v989
    %v1006 = vpack.c.bf16 %v992, %v991
    %v1007 = vpack.c.bf16 %v994, %v993
    %v1008 = vpack.c.bf16 %v996, %v995
    %v1009 = vpack.c.bf16 %v998, %v997
    %v1010 = vpack.c.bf16 %v1000, %v999
    %v1011 = vpack.c.bf16 %v1002, %v1001
    %v1012 = vpack.c.bf16 %v1004, %v1003
    %v1013 = vld [vmem:[#allocation10] sm:$0xf]
    %v1014 = vld [vmem:[#allocation10 + $0x4] sm:$0xf]
    %v1015 = vld [vmem:[#allocation10 + $0x8] sm:$0xf]
    %v1016 = vld [vmem:[#allocation10 + $0xc] sm:$0xf]
    %v1017 = vld [vmem:[#allocation10 + $0x10] sm:$0xf]
    %v1018 = vld [vmem:[#allocation10 + $0x14] sm:$0xf]
    %v1019 = vld [vmem:[#allocation10 + $0x18] sm:$0xf]
    %v1020 = vld [vmem:[#allocation10 + $0x1c] sm:$0xf]
    %v1021 = vld [vmem:[#allocation10 + $0x20] sm:$0xf]
    %v1022 = vld [vmem:[#allocation10 + $0x24] sm:$0xf]
    %v1023 = vld [vmem:[#allocation10 + $0x28] sm:$0xf]
    %v1024 = vld [vmem:[#allocation10 + $0x2c] sm:$0xf]
    %v1025 = vld [vmem:[#allocation10 + $0x30] sm:$0xf]
    %v1026 = vld [vmem:[#allocation10 + $0x34] sm:$0xf]
    %v1027 = vld [vmem:[#allocation10 + $0x38] sm:$0xf]
    %v1028 = vld [vmem:[#allocation10 + $0x3c] sm:$0xf]
    %v1029 = vld [vmem:[%s7] sm:$0x1]
    %v1031 = vlaneseq
    %v1032 = vshrl.u32 %v1031, 7
    %v1033 = vsub.s32 0, %v1032
    %v1034 = vrot.slane %v1029, %v1033
    %v1052 = vunpack.c.l.b16 %v1013
    %v1053 = vunpack.c.l.b16 %v1014
    %v1054 = vunpack.c.l.b16 %v1015
    %v1055 = vunpack.c.l.b16 %v1016
    %v1056 = vunpack.c.l.b16 %v1017
    %v1057 = vunpack.c.l.b16 %v1018
    %v1058 = vunpack.c.l.b16 %v1019
    %v1059 = vunpack.c.l.b16 %v1020
    %v1060 = vunpack.c.l.b16 %v1021
    %v1061 = vunpack.c.l.b16 %v1022
    %v1062 = vunpack.c.l.b16 %v1023
    %v1063 = vunpack.c.l.b16 %v1024
    %v1064 = vunpack.c.l.b16 %v1025
    %v1065 = vunpack.c.l.b16 %v1026
    %v1066 = vunpack.c.l.b16 %v1027
    %v1067 = vunpack.c.l.b16 %v1028
    %v1068 = vpack.c.b16 %v1053, %v1052
    %v1069 = vpack.c.b16 %v1055, %v1054
    %v1070 = vpack.c.b16 %v1057, %v1056
    %v1071 = vpack.c.b16 %v1059, %v1058
    %v1072 = vpack.c.b16 %v1061, %v1060
    %v1073 = vpack.c.b16 %v1063, %v1062
    %v1074 = vpack.c.b16 %v1065, %v1064
    %v1075 = vpack.c.b16 %v1067, %v1066
    %1084 = vmatprep.subr.bf16.mxu0 0
    %1085 = vmatpush1.bf16.msra.mxu0 %v1075
    %1086 = vmatprep.subr.bf16.mxu0 0
    %1087 = vmatpush1.bf16.msra.mxu0 %v1074
    %1088 = vmatprep.subr.bf16.mxu0 0
    %1089 = vmatpush1.bf16.msra.mxu0 %v1073
    %1090 = vmatprep.subr.bf16.mxu0 0
    %1091 = vmatpush1.bf16.msra.mxu0 %v1072
    %1092 = vmatprep.subr.bf16.mxu0 0
    %1093 = vmatpush1.bf16.msra.mxu0 %v1071
    %1094 = vmatprep.subr.bf16.mxu0 0
    %1095 = vmatpush1.bf16.msra.mxu0 %v1070
    %1096 = vmatprep.subr.bf16.mxu0 0
    %1097 = vmatpush1.bf16.msra.mxu0 %v1069
    %1098 = vmatprep.subr.bf16.mxu0 0
    %1099 = vmatpush1.bf16.msra.mxu0 %v1068
    %1100 = vmatprep.subr.bf16.mxu0 0
    %1101 = vmatpush2.bf16.msra.mxu0 0
    %1102 = vmatprep.subr.bf16.mxu0 0
    %1103 = vmatpush2.bf16.msra.mxu0 0
    %1104 = vmatprep.subr.bf16.mxu0 0
    %1105 = vmatpush2.bf16.msra.mxu0 0
    %1106 = vmatprep.subr.bf16.mxu0 0
    %1107 = vmatpush2.bf16.msra.mxu0 0
    %1108 = vmatprep.subr.bf16.mxu0 0
    %1109 = vmatpush2.bf16.msra.mxu0 0
    %1110 = vmatprep.subr.bf16.mxu0 0
    %1111 = vmatpush2.bf16.msra.mxu0 0
    %1112 = vmatprep.subr.bf16.mxu0 0
    %1113 = vmatpush2.bf16.msra.mxu0 0
    %1114 = vmatprep.subr.bf16.mxu0 0
    %1115 = vmatpush2.bf16.msra.mxu0 0
    %1116 = vmatprep.mubr.bf16.mxu0 0
    %1117 = vmatmul.mubr.bf16.gmra.mxu0 %v1005
    %v1118 = vpop.f32.mrf.mxu0
    %v1119 = vadd.f32 %v1034, %v1118
    %v1120 = vpop.f32.mrf.mxu0
    %v1121 = vpop.f32.mrf.mxu0
    %v1122 = vadd.f32 %v1034, %v1121
    %v1123 = vpop.f32.mrf.mxu0
    %1124 = vmatprep.mubr.bf16.mxu0 0
    %1125 = vmatmul.mubr.bf16.gmra.mxu0 %v1006
    %v1126 = vpop.f32.mrf.mxu0
    %v1127 = vadd.f32 %v1034, %v1126
    %v1128 = vpop.f32.mrf.mxu0
    %v1129 = vpop.f32.mrf.mxu0
    %v1130 = vadd.f32 %v1034, %v1129
    %v1131 = vpop.f32.mrf.mxu0
    %1132 = vmatprep.mubr.bf16.mxu0 0
    %1133 = vmatmul.mubr.bf16.gmra.mxu0 %v1007
    %v1134 = vpop.f32.mrf.mxu0
    %v1135 = vadd.f32 %v1034, %v1134
    %v1136 = vpop.f32.mrf.mxu0
    %v1137 = vpop.f32.mrf.mxu0
    %v1138 = vadd.f32 %v1034, %v1137
    %v1139 = vpop.f32.mrf.mxu0
    %1140 = vmatprep.mubr.bf16.mxu0 0
    %1141 = vmatmul.mubr.bf16.gmra.mxu0 %v1008
    %v1142 = vpop.f32.mrf.mxu0
    %v1143 = vadd.f32 %v1034, %v1142
    %v1144 = vpop.f32.mrf.mxu0
    %v1145 = vpop.f32.mrf.mxu0
    %v1146 = vadd.f32 %v1034, %v1145
    %v1147 = vpop.f32.mrf.mxu0
    %1148 = vmatprep.mubr.bf16.mxu0 0
    %1149 = vmatmul.mubr.bf16.gmra.mxu0 %v1009
    %v1150 = vpop.f32.mrf.mxu0
    %v1151 = vadd.f32 %v1034, %v1150
    %v1152 = vpop.f32.mrf.mxu0
    %v1153 = vpop.f32.mrf.mxu0
    %v1154 = vadd.f32 %v1034, %v1153
    %v1155 = vpop.f32.mrf.mxu0
    %1156 = vmatprep.mubr.bf16.mxu0 0
    %1157 = vmatmul.mubr.bf16.gmra.mxu0 %v1010
    %v1158 = vpop.f32.mrf.mxu0
    %v1159 = vadd.f32 %v1034, %v1158
    %v1160 = vpop.f32.mrf.mxu0
    %v1161 = vpop.f32.mrf.mxu0
    %v1162 = vadd.f32 %v1034, %v1161
    %v1163 = vpop.f32.mrf.mxu0
    %1164 = vmatprep.mubr.bf16.mxu0 0
    %1165 = vmatmul.mubr.bf16.gmra.mxu0 %v1011
    %v1166 = vpop.f32.mrf.mxu0
    %v1167 = vadd.f32 %v1034, %v1166
    %v1168 = vpop.f32.mrf.mxu0
    %v1169 = vpop.f32.mrf.mxu0
    %v1170 = vadd.f32 %v1034, %v1169
    %v1171 = vpop.f32.mrf.mxu0
    %1172 = vmatprep.mubr.bf16.mxu0 0
    %1173 = vmatmul.mubr.bf16.gmra.mxu0 %v1012
    %v1174 = vpop.f32.mrf.mxu0
    %v1175 = vadd.f32 %v1034, %v1174
    %v1176 = vpop.f32.mrf.mxu0
    %v1177 = vpop.f32.mrf.mxu0
    %v1178 = vadd.f32 %v1034, %v1177
    %v1179 = vpop.f32.mrf.mxu0
    %1180 = vdwg.mxu0
    %1181 = vst [vmem:[#allocation11] sm:$0xff] %v1119
    %1182 = vst [vmem:[#allocation11 + $0x8] sm:$0xff] %v1122
    %1183 = vst [vmem:[#allocation11 + $0x10] sm:$0xff] %v1127
    %1184 = vst [vmem:[#allocation11 + $0x18] sm:$0xff] %v1130
    %1185 = vst [vmem:[#allocation11 + $0x20] sm:$0xff] %v1135
    %1186 = vst [vmem:[#allocation11 + $0x28] sm:$0xff] %v1138
    %1187 = vst [vmem:[#allocation11 + $0x30] sm:$0xff] %v1143
    %1188 = vst [vmem:[#allocation11 + $0x38] sm:$0xff] %v1146
    %1189 = vst [vmem:[#allocation11 + $0x40] sm:$0xff] %v1151
    %1190 = vst [vmem:[#allocation11 + $0x48] sm:$0xff] %v1154
    %1191 = vst [vmem:[#allocation11 + $0x50] sm:$0xff] %v1159
    %1192 = vst [vmem:[#allocation11 + $0x58] sm:$0xff] %v1162
    %1193 = vst [vmem:[#allocation11 + $0x60] sm:$0xff] %v1167
    %1194 = vst [vmem:[#allocation11 + $0x68] sm:$0xff] %v1170
    %1195 = vst [vmem:[#allocation11 + $0x70] sm:$0xff] %v1175
    %1196 = vst [vmem:[#allocation11 + $0x78] sm:$0xff] %v1178
    // Predicated region
    $region54: #{tpu_custom_call.1} parent=1 // pred_check
      _
    $region55: #{tpu_custom_call.1} parent=1 // pred_check_branch
      %1198 = sbr.rel (0) target = $region57
    $region56: #{tpu_custom_call.1} parent=1 // pred_region
      %s1200 = ssub.s32 2048, 2048
      %1201 = vsyncadd [#allocation4], %s1200
      %s1202 = sshll.u32 [#allocation11], 4
      %s1203 = int_to_ptr.vmem [resolvable:$true] %s1202
      %1208 = dma.vmem_to_hbm [thread:$0]  %s1203, 2048, %s8, [#allocation4], 128, 128, 8
    $region57: #{tpu_custom_call.1} parent=1 // pred_fallthru
      _
    // Predicated region
    $region58: #{tpu_custom_call.1} parent=1 // pred_check
      _
    $region59: #{tpu_custom_call.1} parent=1 // pred_check_branch
      %1210 = sbr.rel (0) target = $region61
    $region60: #{tpu_custom_call.1} parent=1 // pred_region
      %1211 = dma.done [#allocation4], 2048
    $region61: #{tpu_custom_call.1} parent=1 // pred_fallthru
      _
    %1212 = vsyncpa [#allocation3], 1
    %1213 = vsyncpa [#allocation6], 1
    %1214 = vsyncpa [#allocation9], 1
    %1215 = vsyncpa [#allocation4], 1

</llo_original>
